<compile_context>
chip_gen: v7x
topology: tpu7x:2x2x1
jax: 0.10.0
libtpu: 0.0.40
codegen_flags: <defaults>
</compile_context>

<pallas_src>
import jax
import jax.numpy as jnp
from jax.experimental import pallas as pl
from jax.experimental.pallas import tpu as pltpu


_VMEM_LIMIT = 40 * 1024 * 1024  # safe for v7x (64 MiB physical); fine on v5e/v6e


def _cdiv(a, b):
    return -(-a // b)


def _round_up(x, m):
    return _cdiv(x, m) * m


def _pick_tile(dim, cap, align):
    """Largest ~balanced tile <= cap, multiple of `align`, minimizing padding."""
    padded = _round_up(dim, align)
    steps = _cdiv(padded, cap)
    return _round_up(_cdiv(padded, steps), align)


def _pad2d(a, rows, cols):
    r, c = a.shape
    if r == rows and c == cols:
        return a
    return jnp.pad(a, ((0, rows - r), (0, cols - c)))


# --------------------------------------------------------------------------
# Phase 1: h = x @ W^T + b   (computed once, emitted in compute_dtype)
# --------------------------------------------------------------------------
def linear_kernel(x_ref, wt_ref, b_ref, h_ref):
    # x_ref: (TK, C) f32, wt_ref: (C, TN) f32, b_ref: (1, TN) f32
    h = jnp.dot(x_ref[...], wt_ref[...], preferred_element_type=jnp.float32)
    h_ref[...] = (h + b_ref[...]).astype(h_ref.dtype)


# --------------------------------------------------------------------------
# Phase 2: out = adj @ h   (tiled, reduction axis last, accumulate into o_ref)
# --------------------------------------------------------------------------
def adj_matmul_kernel(adj_ref, h_ref, o_ref):
    # adj_ref: (TM, TK), h_ref: (TK, TN) in compute_dtype; o_ref: (TM, TN) f32.
    @pl.when(pl.program_id(2) == 0)
    def _():
        o_ref[...] = jnp.zeros_like(o_ref)

    o_ref[...] += jnp.dot(adj_ref[...], h_ref[...],
                          preferred_element_type=jnp.float32)


def graph_conv(x, adj_mat, weight, bias, *, compute_dtype=jnp.bfloat16,
               tm=None, tn=None, tk=None):
    """
    x:       [N, C]  node features
    adj_mat: [N, N]  adjacency
    weight:  [F, C]  (PyTorch nn.Linear convention: out x in)
    bias:    [F]
    returns: [N, F]  float32  (== adj_mat @ (x @ weight.T + bias))
    """
    N, C = x.shape
    F = weight.shape[0]

    x = x.astype(jnp.float32)
    wt = weight.T.astype(jnp.float32)            # [C, F]
    b2 = bias.reshape(1, F).astype(jnp.float32)  # [1, F]

    # ---- tile selection (lane-dense, balanced against padding) --------------
    TM = tm if tm is not None else _pick_tile(N, 512, 8)      # adj / out rows
    TN = tn if tn is not None else _pick_tile(F, 512, 128)    # output features
    TK = tk if tk is not None else _pick_tile(N, 2048, 128)   # reduction (adj cols)

    if TM % 8 != 0 or TN % 128 != 0 or TK % 128 != 0:
        raise ValueError(
            f"tile sizes must satisfy TM%8==0, TN%128==0, TK%128==0; "
            f"got TM={TM}, TN={TN}, TK={TK}")

    Nr = _round_up(N, TM)   # padded adj / out rows
    Nk = _round_up(N, TK)   # padded adj cols == padded h rows
    Fp = _round_up(F, TN)   # padded features (lane-dense output slab)

    # adj zero-padded along the reduction axis (required: annihilates the bias
    # that appears in h's padded rows).
    adj_p = _pad2d(adj_mat.astype(compute_dtype), Nr, Nk)
    x_p = _pad2d(x, Nk, C)
    wt_p = _pad2d(wt, C, Fp)
    b_p = _pad2d(b2, 1, Fp)

    # ---- phase 1: linear ----------------------------------------------------
    h_p = pl.pallas_call(
        linear_kernel,
        out_shape=jax.ShapeDtypeStruct((Nk, Fp), compute_dtype),
        grid_spec=pltpu.PrefetchScalarGridSpec(
            num_scalar_prefetch=0,
            grid=(Nk // TK, Fp // TN),
            in_specs=[
                pl.BlockSpec((TK, C), lambda r, j: (r, 0)),   # x row tile
                pl.BlockSpec((C, TN), lambda r, j: (0, j)),   # W^T column tile
                pl.BlockSpec((1, TN), lambda r, j: (0, j)),   # bias tile
            ],
            out_specs=pl.BlockSpec((TK, TN), lambda r, j: (r, j)),
        ),
        compiler_params=pltpu.CompilerParams(
            dimension_semantics=("parallel", "parallel"),
            vmem_limit_bytes=_VMEM_LIMIT,
        ),
    )(x_p, wt_p, b_p)

    # ---- phase 2: adj @ h ---------------------------------------------------
    out_p = pl.pallas_call(
        adj_matmul_kernel,
        out_shape=jax.ShapeDtypeStruct((Nr, Fp), jnp.float32),
        grid_spec=pltpu.PrefetchScalarGridSpec(
            num_scalar_prefetch=0,
            grid=(Nr // TM, Fp // TN, Nk // TK),   # reduction axis last
            in_specs=[
                pl.BlockSpec((TM, TK), lambda i, j, k: (i, k)),   # adj tile
                pl.BlockSpec((TK, TN), lambda i, j, k: (k, j)),   # h tile
            ],
            out_specs=pl.BlockSpec((TM, TN), lambda i, j, k: (i, j)),
        ),
        compiler_params=pltpu.CompilerParams(
            dimension_semantics=("parallel", "parallel", "arbitrary"),
            vmem_limit_bytes=_VMEM_LIMIT,
        ),
    )(adj_p, h_p)

    if Nr == N and Fp == F:
        return out_p
    return out_p[:N, :F]


def _reference(x, adj, weight, bias):
    h = jnp.dot(x, weight.T, precision=jax.lax.Precision.HIGHEST) + bias
    return jnp.dot(adj, h, precision=jax.lax.Precision.HIGHEST)


if __name__ == "__main__":
    key = jax.random.PRNGKey(0)
    k_x, k_adj, k_w, k_b = jax.random.split(key, 4)

    # --- test 1: small shapes consistent with the module's forward -----------
    N, C, F = 16, 8, 32
    x = jax.random.normal(k_x, (N, C), dtype=jnp.float32)
    adj = jax.random.uniform(k_adj, (N, N), dtype=jnp.float32)
    bound = 1.0 / (C ** 0.5)
    weight = jax.random.uniform(k_w, (F, C), minval=-bound, maxval=bound,
                                dtype=jnp.float32)
    bias = jax.random.uniform(k_b, (F,), minval=-bound, maxval=bound,
                              dtype=jnp.float32)

    ref = _reference(x, adj, weight, bias)

    out_bf16 = jax.block_until_ready(graph_conv(x, adj, weight, bias))
    assert out_bf16.shape == (N, F)
    assert jnp.allclose(out_bf16, ref, atol=5e-2, rtol=5e-2)

    out_f32 = jax.block_until_ready(
        graph_conv(x, adj, weight, bias, compute_dtype=jnp.float32))
    assert jnp.allclose(out_f32, ref, atol=1e-3, rtol=1e-3)

    # --- test 2: multi-tile / multi-step reduction path ----------------------
    N2, C2, F2 = 256, 8, 32
    k2 = jax.random.split(jax.random.PRNGKey(1), 4)
    x2 = jax.random.normal(k2[0], (N2, C2), dtype=jnp.float32)
    adj2 = jax.random.uniform(k2[1], (N2, N2), dtype=jnp.float32)
    w2 = jax.random.uniform(k2[2], (F2, C2), minval=-bound, maxval=bound,
                            dtype=jnp.float32)
    b2 = jax.random.uniform(k2[3], (F2,), minval=-bound, maxval=bound,
                            dtype=jnp.float32)
    ref2 = _reference(x2, adj2, w2, b2)

    # f32 path with forced small tiles: exercises multiple row/reduction tiles
    # and direct-into-o_ref accumulation with tight tolerance.
    out2_f32 = jax.block_until_ready(
        graph_conv(x2, adj2, w2, b2, compute_dtype=jnp.float32,
                   tm=128, tn=128, tk=128))
    assert out2_f32.shape == (N2, F2)
    assert jnp.allclose(out2_f32, ref2, atol=1e-2, rtol=1e-2)

    # default bf16 path (auto tiles)
    out2_bf16 = jax.block_until_ready(graph_conv(x2, adj2, w2, b2))
    assert jnp.allclose(out2_bf16, ref2, atol=2e-1, rtol=5e-2)

    print("KERNEL_OK")
</pallas_src>

<mosaic_0001>
module attributes {stable_mosaic.version = 11 : i64} {
  func.func @linear_kernel(%arg0: i32, %arg1: i32, %arg2: memref<128x8xf32, #tpu.memory_space<vmem>>, %arg3: memref<8x128xf32, #tpu.memory_space<vmem>>, %arg4: memref<1x128xf32, #tpu.memory_space<vmem>>, %arg5: memref<128x128xbf16, #tpu.memory_space<vmem>>) attributes {dimension_semantics = [#tpu.dimension_semantics<parallel>, #tpu.dimension_semantics<parallel>], iteration_bounds = array<i64: 1, 1>, scalar_prefetch = 0 : i64, scratch_operands = 0 : i64, tpu.core_type = #tpu.core_type<tc>, window_params = [{transform_indices = @transform_0, window_bounds = array<i64: 128, 8>}, {transform_indices = @transform_1, window_bounds = array<i64: 8, 128>}, {transform_indices = @transform_2, window_bounds = array<i64: 1, 128>}, {transform_indices = @transform_3, window_bounds = array<i64: 128, 128>}]} {
    %c0 = arith.constant 0 : index
    %c0_0 = arith.constant 0 : index
    %0 = vector.load %arg2[%c0, %c0_0] : memref<128x8xf32, #tpu.memory_space<vmem>>, vector<128x8xf32>
    %c0_1 = arith.constant 0 : index
    %c0_2 = arith.constant 0 : index
    %1 = vector.load %arg3[%c0_1, %c0_2] : memref<8x128xf32, #tpu.memory_space<vmem>>, vector<8x128xf32>
    %cst = arith.constant dense<0.000000e+00> : vector<128x128xf32>
    %2 = tpu.matmul %0, %1, %cst {dimension_numbers = #tpu.dot_dimension_numbers<[1], [0], [0], [1], [0, 0, 1, 1], [], []>} : vector<128x8xf32>, vector<8x128xf32>, vector<128x128xf32> -> vector<128x128xf32>
    %c0_3 = arith.constant 0 : index
    %c0_4 = arith.constant 0 : index
    %3 = vector.load %arg4[%c0_3, %c0_4] : memref<1x128xf32, #tpu.memory_space<vmem>>, vector<1x128xf32>
    %4 = vector.broadcast %3 : vector<1x128xf32> to vector<128x128xf32>
    %5 = arith.addf %2, %4 : vector<128x128xf32>
    %6 = arith.truncf %5 : vector<128x128xf32> to vector<128x128xbf16>
    %c0_5 = arith.constant 0 : index
    %c0_6 = arith.constant 0 : index
    %7 = vector.load %arg5[%c0_5, %c0_6] : memref<128x128xbf16, #tpu.memory_space<vmem>>, vector<128x128xbf16>
    tpu.vector_store %arg5[%c0_5, %c0_6], %6 {strides = array<i32>} : memref<128x128xbf16, #tpu.memory_space<vmem>>, vector<128x128xbf16>,
    return
  }
  func.func @transform_0(%arg0: i32, %arg1: i32) -> (i32, i32) {
    %c0_i32 = arith.constant 0 : i32
    %c0_i32_0 = arith.constant 0 : i32
    return %arg0, %c0_i32 : i32, i32
  }
  func.func @transform_1(%arg0: i32, %arg1: i32) -> (i32, i32) {
    %c0_i32 = arith.constant 0 : i32
    %c0_i32_0 = arith.constant 0 : i32
    return %c0_i32, %arg1 : i32, i32
  }
  func.func @transform_2(%arg0: i32, %arg1: i32) -> (i32, i32) {
    %c0_i32 = arith.constant 0 : i32
    %c0_i32_0 = arith.constant 0 : i32
    return %c0_i32, %arg1 : i32, i32
  }
  func.func @transform_3(%arg0: i32, %arg1: i32) -> (i32, i32) {
    %c0_i32 = arith.constant 0 : i32
    return %arg0, %arg1 : i32, i32
  }
}

</mosaic_0001>

<llo_original>
// kernel: tpu_custom_call.1
$region0: #{tpu_custom_call.1}
  #allocation0 [shape = 'u32[]', space=smem, size = 0x4, offset = 0x4, fixed_abs, tag = 'smem constant byte address 0x4 - core index']
  #allocation1 [shape = 'u32[144,128]{1,0:T(1,128)}', space=vmem, size = 0x12000, scoped, tag = 'internal scratch']
  %s0 = inlined_call_operand.vmem [shape: f32[128,8], index: 0, kind: input, shape index: {}]
  %s1 = inlined_call_operand.vmem [shape: f32[8,128], index: 1, kind: input, shape index: {}]
  %s2 = inlined_call_operand.vmem [shape: f32[1,128], index: 2, kind: input, shape index: {}]
  %s3 = inlined_call_operand.hbm [shape: bf16[128,128], index: 3, kind: output, shape index: {}]
  %s4 = sld [smem:[#allocation0]]
  $region22: #{tpu_custom_call.1} parent=0
    _
  %s6 = ssub.s32 1, %s4
  %s7 = scalar_select 0, %s6, %s4
  $region1: #{tpu_custom_call.1} parent=0
    #allocation2 [shape = 'u8[32768]{0}', space=vmem, size = 0x8000, scoped, tag = 'output window, operand 0, single buffered']
    #allocation3 [shape = 's32[1]{0}', space=sflag, size = 0x4, scoped, tag = 'scoped memory for tpu_custom_call.1']
    %8 = vsyncpa [#allocation3], 0
    // Predicated region
    $region2: #{tpu_custom_call.1} parent=1 // pred_check
      _
    $region3: #{tpu_custom_call.1} parent=1 // pred_check_branch
      %10 = sbr.rel (0) target = $region5
    $region4: #{tpu_custom_call.1} parent=1 // pred_region
      _
    $region5: #{tpu_custom_call.1} parent=1 // pred_fallthru
      _
    // Predicated region
    $region6: #{tpu_custom_call.1} parent=1 // pred_check
      _
    $region7: #{tpu_custom_call.1} parent=1 // pred_check_branch
      %12 = sbr.rel (0) target = $region9
    $region8: #{tpu_custom_call.1} parent=1 // pred_region
      _
    $region9: #{tpu_custom_call.1} parent=1 // pred_fallthru
      _
    // Predicated region
    $region10: #{tpu_custom_call.1} parent=1 // pred_check
      _
    $region11: #{tpu_custom_call.1} parent=1 // pred_check_branch
      %14 = sbr.rel (0) target = $region13
    $region12: #{tpu_custom_call.1} parent=1 // pred_region
      _
    $region13: #{tpu_custom_call.1} parent=1 // pred_fallthru
      _
    %v15 = vld [vmem:[%s0] sm:$0xff]
    %v16 = vld [vmem:[%s0 + $0x8] sm:$0xff]
    %v17 = vld [vmem:[%s0 + $0x10] sm:$0xff]
    %v18 = vld [vmem:[%s0 + $0x18] sm:$0xff]
    %v19 = vld [vmem:[%s0 + $0x20] sm:$0xff]
    %v20 = vld [vmem:[%s0 + $0x28] sm:$0xff]
    %v21 = vld [vmem:[%s0 + $0x30] sm:$0xff]
    %v22 = vld [vmem:[%s0 + $0x38] sm:$0xff]
    %v23 = vld [vmem:[%s0 + $0x40] sm:$0xff]
    %v24 = vld [vmem:[%s0 + $0x48] sm:$0xff]
    %v25 = vld [vmem:[%s0 + $0x50] sm:$0xff]
    %v26 = vld [vmem:[%s0 + $0x58] sm:$0xff]
    %v27 = vld [vmem:[%s0 + $0x60] sm:$0xff]
    %v28 = vld [vmem:[%s0 + $0x68] sm:$0xff]
    %v29 = vld [vmem:[%s0 + $0x70] sm:$0xff]
    %v30 = vld [vmem:[%s0 + $0x78] sm:$0xff]
    %v31 = vld [vmem:[%s1] sm:$0xff]
    %v32 = vld [vmem:[%s2] sm:$0x1]
    %v34 = vlaneseq
    %v35 = vshrl.u32 %v34, 7
    %v36 = vsub.s32 0, %v35
    %v37 = vrot.slane %v32, %v36
    %vm39 = vcmask 64512
    %v41 = vsel %vm39, %v15, 0
    %v44 = vsel %vm39, %v16, 0
    %v47 = vsel %vm39, %v17, 0
    %v50 = vsel %vm39, %v18, 0
    %v53 = vsel %vm39, %v19, 0
    %v56 = vsel %vm39, %v20, 0
    %v59 = vsel %vm39, %v21, 0
    %v62 = vsel %vm39, %v22, 0
    %v65 = vsel %vm39, %v23, 0
    %v68 = vsel %vm39, %v24, 0
    %v71 = vsel %vm39, %v25, 0
    %v74 = vsel %vm39, %v26, 0
    %v77 = vsel %vm39, %v27, 0
    %v80 = vsel %vm39, %v28, 0
    %v83 = vsel %vm39, %v29, 0
    %v86 = vsel %vm39, %v30, 0
    %88 = vmatprep.subr.mxu0 0.0
    %89 = vmatpush1.msra.mxu0 %v31
    %90 = vmatprep.subr.mxu0 0.0
    %91 = vmatpush1.msra.mxu0 0.0
    %92 = vmatprep.subr.mxu0 0.0
    %93 = vmatpush1.msra.mxu0 0.0
    %94 = vmatprep.subr.mxu0 0.0
    %95 = vmatpush1.msra.mxu0 0.0
    %96 = vmatprep.subr.mxu0 0.0
    %97 = vmatpush1.msra.mxu0 0.0
    %98 = vmatprep.subr.mxu0 0.0
    %99 = vmatpush1.msra.mxu0 0.0
    %100 = vmatprep.subr.mxu0 0.0
    %101 = vmatpush1.msra.mxu0 0.0
    %102 = vmatprep.subr.mxu0 0.0
    %103 = vmatpush1.msra.mxu0 0.0
    %104 = vmatprep.subr.mxu0 0.0
    %105 = vmatpush1.msra.mxu0 0.0
    %106 = vmatprep.subr.mxu0 0.0
    %107 = vmatpush1.msra.mxu0 0.0
    %108 = vmatprep.subr.mxu0 0.0
    %109 = vmatpush1.msra.mxu0 0.0
    %110 = vmatprep.subr.mxu0 0.0
    %111 = vmatpush1.msra.mxu0 0.0
    %112 = vmatprep.subr.mxu0 0.0
    %113 = vmatpush1.msra.mxu0 0.0
    %114 = vmatprep.subr.mxu0 0.0
    %115 = vmatpush1.msra.mxu0 0.0
    %116 = vmatprep.subr.mxu0 0.0
    %117 = vmatpush1.msra.mxu0 0.0
    %118 = vmatprep.subr.mxu0 0.0
    %119 = vmatpush1.msra.mxu0 0.0
    %120 = vmatprep.subr.mxu0 0.0
    %121 = vmatpush1.msra.mxu0 0.0
    %122 = vmatprep.subr.mxu0 0.0
    %123 = vmatpush1.msra.mxu0 0.0
    %124 = vmatprep.subr.mxu0 0.0
    %125 = vmatpush1.msra.mxu0 0.0
    %126 = vmatprep.subr.mxu0 0.0
    %127 = vmatpush1.msra.mxu0 0.0
    %128 = vmatprep.subr.mxu0 0.0
    %129 = vmatpush1.msra.mxu0 0.0
    %130 = vmatprep.subr.mxu0 0.0
    %131 = vmatpush1.msra.mxu0 0.0
    %132 = vmatprep.subr.mxu0 0.0
    %133 = vmatpush1.msra.mxu0 0.0
    %134 = vmatprep.subr.mxu0 0.0
    %135 = vmatpush1.msra.mxu0 0.0
    %136 = vmatprep.subr.mxu0 0.0
    %137 = vmatpush1.msra.mxu0 0.0
    %138 = vmatprep.subr.mxu0 0.0
    %139 = vmatpush1.msra.mxu0 0.0
    %140 = vmatprep.subr.mxu0 0.0
    %141 = vmatpush1.msra.mxu0 0.0
    %142 = vmatprep.subr.mxu0 0.0
    %143 = vmatpush1.msra.mxu0 0.0
    %144 = vmatprep.subr.mxu0 0.0
    %145 = vmatpush1.msra.mxu0 0.0
    %146 = vmatprep.subr.mxu0 0.0
    %147 = vmatpush1.msra.mxu0 0.0
    %148 = vmatprep.subr.mxu0 0.0
    %149 = vmatpush1.msra.mxu0 0.0
    %150 = vmatprep.subr.mxu0 0.0
    %151 = vmatpush1.msra.mxu0 0.0
    %152 = vmatprep.mubr.f32.mxu0 0.0
    %153 = vmatmul.mubr.f32.gmra.mrb[0].mxu0 %v41
    %v154 = vpop.f32.mrb[0].mxu0
    %v155 = vadd.f32 %v37, %v154
    %v156 = vpop.f32.mrb[0].mxu0
    %157 = vmatprep.mubr.f32.mxu0 0.0
    %158 = vmatmul.mubr.f32.gmra.mrb[0].mxu0 %v44
    %v159 = vpop.f32.mrb[0].mxu0
    %v160 = vadd.f32 %v37, %v159
    %v161 = vpop.f32.mrb[0].mxu0
    %162 = vmatprep.mubr.f32.mxu0 0.0
    %163 = vmatmul.mubr.f32.gmra.mrb[0].mxu0 %v47
    %v164 = vpop.f32.mrb[0].mxu0
    %v165 = vadd.f32 %v37, %v164
    %v166 = vpop.f32.mrb[0].mxu0
    %167 = vmatprep.mubr.f32.mxu0 0.0
    %168 = vmatmul.mubr.f32.gmra.mrb[0].mxu0 %v50
    %v169 = vpop.f32.mrb[0].mxu0
    %v170 = vadd.f32 %v37, %v169
    %v171 = vpop.f32.mrb[0].mxu0
    %172 = vmatprep.mubr.f32.mxu0 0.0
    %173 = vmatmul.mubr.f32.gmra.mrb[0].mxu0 %v53
    %v174 = vpop.f32.mrb[0].mxu0
    %v175 = vadd.f32 %v37, %v174
    %v176 = vpop.f32.mrb[0].mxu0
    %177 = vmatprep.mubr.f32.mxu0 0.0
    %178 = vmatmul.mubr.f32.gmra.mrb[0].mxu0 %v56
    %v179 = vpop.f32.mrb[0].mxu0
    %v180 = vadd.f32 %v37, %v179
    %v181 = vpop.f32.mrb[0].mxu0
    %182 = vmatprep.mubr.f32.mxu0 0.0
    %183 = vmatmul.mubr.f32.gmra.mrb[0].mxu0 %v59
    %v184 = vpop.f32.mrb[0].mxu0
    %v185 = vadd.f32 %v37, %v184
    %v186 = vpop.f32.mrb[0].mxu0
    %187 = vmatprep.mubr.f32.mxu0 0.0
    %188 = vmatmul.mubr.f32.gmra.mrb[0].mxu0 %v62
    %v189 = vpop.f32.mrb[0].mxu0
    %v190 = vadd.f32 %v37, %v189
    %v191 = vpop.f32.mrb[0].mxu0
    %192 = vmatprep.mubr.f32.mxu0 0.0
    %193 = vmatmul.mubr.f32.gmra.mrb[0].mxu0 %v65
    %v194 = vpop.f32.mrb[0].mxu0
    %v195 = vadd.f32 %v37, %v194
    %v196 = vpop.f32.mrb[0].mxu0
    %197 = vmatprep.mubr.f32.mxu0 0.0
    %198 = vmatmul.mubr.f32.gmra.mrb[0].mxu0 %v68
    %v199 = vpop.f32.mrb[0].mxu0
    %v200 = vadd.f32 %v37, %v199
    %v201 = vpop.f32.mrb[0].mxu0
    %202 = vmatprep.mubr.f32.mxu0 0.0
    %203 = vmatmul.mubr.f32.gmra.mrb[0].mxu0 %v71
    %v204 = vpop.f32.mrb[0].mxu0
    %v205 = vadd.f32 %v37, %v204
    %v206 = vpop.f32.mrb[0].mxu0
    %207 = vmatprep.mubr.f32.mxu0 0.0
    %208 = vmatmul.mubr.f32.gmra.mrb[0].mxu0 %v74
    %v209 = vpop.f32.mrb[0].mxu0
    %v210 = vadd.f32 %v37, %v209
    %v211 = vpop.f32.mrb[0].mxu0
    %212 = vmatprep.mubr.f32.mxu0 0.0
    %213 = vmatmul.mubr.f32.gmra.mrb[0].mxu0 %v77
    %v214 = vpop.f32.mrb[0].mxu0
    %v215 = vadd.f32 %v37, %v214
    %v216 = vpop.f32.mrb[0].mxu0
    %217 = vmatprep.mubr.f32.mxu0 0.0
    %218 = vmatmul.mubr.f32.gmra.mrb[0].mxu0 %v80
    %v219 = vpop.f32.mrb[0].mxu0
    %v220 = vadd.f32 %v37, %v219
    %v221 = vpop.f32.mrb[0].mxu0
    %222 = vmatprep.mubr.f32.mxu0 0.0
    %223 = vmatmul.mubr.f32.gmra.mrb[0].mxu0 %v83
    %v224 = vpop.f32.mrb[0].mxu0
    %v225 = vadd.f32 %v37, %v224
    %v226 = vpop.f32.mrb[0].mxu0
    %227 = vmatprep.mubr.f32.mxu0 0.0
    %228 = vmatmul.mubr.f32.gmra.mrb[0].mxu0 %v86
    %v229 = vpop.f32.mrb[0].mxu0
    %v230 = vadd.f32 %v37, %v229
    %v231 = vpop.f32.mrb[0].mxu0
    %232 = vdwg.mxu0
    %v233 = vpack.c.bf16 %v160, %v155
    %v234 = vpack.c.bf16 %v170, %v165
    %v235 = vpack.c.bf16 %v180, %v175
    %v236 = vpack.c.bf16 %v190, %v185
    %v237 = vpack.c.bf16 %v200, %v195
    %v238 = vpack.c.bf16 %v210, %v205
    %v239 = vpack.c.bf16 %v220, %v215
    %v240 = vpack.c.bf16 %v230, %v225
    %v249 = vunpack.c.l.b16 %v233
    %v250 = vunpack.c.h.b16 %v233
    %v251 = vunpack.c.l.b16 %v234
    %v252 = vunpack.c.h.b16 %v234
    %v253 = vunpack.c.l.b16 %v235
    %v254 = vunpack.c.h.b16 %v235
    %v255 = vunpack.c.l.b16 %v236
    %v256 = vunpack.c.h.b16 %v236
    %v257 = vunpack.c.l.b16 %v237
    %v258 = vunpack.c.h.b16 %v237
    %v259 = vunpack.c.l.b16 %v238
    %v260 = vunpack.c.h.b16 %v238
    %v261 = vunpack.c.l.b16 %v239
    %v262 = vunpack.c.h.b16 %v239
    %v263 = vunpack.c.l.b16 %v240
    %v264 = vunpack.c.h.b16 %v240
    %v265 = vpack.c.b16 %v249, %v249
    %v266 = vpack.c.b16 %v250, %v250
    %v267 = vpack.c.b16 %v251, %v251
    %v268 = vpack.c.b16 %v252, %v252
    %v269 = vpack.c.b16 %v253, %v253
    %v270 = vpack.c.b16 %v254, %v254
    %v271 = vpack.c.b16 %v255, %v255
    %v272 = vpack.c.b16 %v256, %v256
    %v273 = vpack.c.b16 %v257, %v257
    %v274 = vpack.c.b16 %v258, %v258
    %v275 = vpack.c.b16 %v259, %v259
    %v276 = vpack.c.b16 %v260, %v260
    %v277 = vpack.c.b16 %v261, %v261
    %v278 = vpack.c.b16 %v262, %v262
    %v279 = vpack.c.b16 %v263, %v263
    %v280 = vpack.c.b16 %v264, %v264
    %297 = vst [vmem:[#allocation2] sm:$0xf] %v265
    %298 = vst [vmem:[#allocation2 + $0x4] sm:$0xf] %v266
    %299 = vst [vmem:[#allocation2 + $0x8] sm:$0xf] %v267
    %300 = vst [vmem:[#allocation2 + $0xc] sm:$0xf] %v268
    %301 = vst [vmem:[#allocation2 + $0x10] sm:$0xf] %v269
    %302 = vst [vmem:[#allocation2 + $0x14] sm:$0xf] %v270
    %303 = vst [vmem:[#allocation2 + $0x18] sm:$0xf] %v271
    %304 = vst [vmem:[#allocation2 + $0x1c] sm:$0xf] %v272
    %305 = vst [vmem:[#allocation2 + $0x20] sm:$0xf] %v273
    %306 = vst [vmem:[#allocation2 + $0x24] sm:$0xf] %v274
    %307 = vst [vmem:[#allocation2 + $0x28] sm:$0xf] %v275
    %308 = vst [vmem:[#allocation2 + $0x2c] sm:$0xf] %v276
    %309 = vst [vmem:[#allocation2 + $0x30] sm:$0xf] %v277
    %310 = vst [vmem:[#allocation2 + $0x34] sm:$0xf] %v278
    %311 = vst [vmem:[#allocation2 + $0x38] sm:$0xf] %v279
    %312 = vst [vmem:[#allocation2 + $0x3c] sm:$0xf] %v280
    // Predicated region
    $region14: #{tpu_custom_call.1} parent=1 // pred_check
      _
    $region15: #{tpu_custom_call.1} parent=1 // pred_check_branch
      %314 = sbr.rel (0) target = $region17
    $region16: #{tpu_custom_call.1} parent=1 // pred_region
      %s316 = ssub.s32 1024, 1024
      %317 = vsyncadd [#allocation3], %s316
      %s318 = sshll.u32 [#allocation2], 4
      %s319 = int_to_ptr.vmem [resolvable:$true] %s318
      %324 = dma.vmem_to_hbm [thread:$0]  %s319, 1024, %s3, [#allocation3], 64, 64, 4
    $region17: #{tpu_custom_call.1} parent=1 // pred_fallthru
      _
    // Predicated region
    $region18: #{tpu_custom_call.1} parent=1 // pred_check
      _
    $region19: #{tpu_custom_call.1} parent=1 // pred_check_branch
      %326 = sbr.rel (0) target = $region21
    $region20: #{tpu_custom_call.1} parent=1 // pred_region
      %327 = dma.done [#allocation3], 1024
    $region21: #{tpu_custom_call.1} parent=1 // pred_fallthru
      _
    %328 = vsyncpa [#allocation3], 1

</llo_original>
